<compile_context>
chip_gen: v7x
topology: tpu7x:2x2x1
jax: 0.10.0
libtpu: 0.0.40
codegen_flags: <defaults>
</compile_context>

<pallas_src>
import functools
import math

import jax
import jax.numpy as jnp
from jax import lax
from jax.experimental import pallas as pl
from jax.experimental.pallas import tpu as pltpu


def _normed_logreg_kernel(x_ref, w_ref, o_ref, *, mxu_dtype, lane_dense):
    """One row tile: logits = (x / max(||x||, eps)) @ w_n.T, w_n pre-normalized."""
    x = x_ref[...]                                  # (TM, D), f32 or bf16
    w = w_ref[...]                                  # (O, D), already normalized
    x32 = x.astype(jnp.float32)

    a = x32 if mxu_dtype is None else x.astype(mxu_dtype)
    prec = lax.Precision.HIGHEST if mxu_dtype is None else None
    nt = (((1,), (1,)), ((), ()))                   # contract last dims, no batch

    # Deferred row-norm: max(||x||, 1e-12) <=> rsqrt(max(sum(x*x), 1e-24)).
    xsq = x32 * x32

    if lane_dense:
        # O == 1: produce everything lane-major straight off the MXU so the
        # (1, 1, TM) output block is a dense store and no relayout is needed.
        raw_t = lax.dot_general(w, a, nt, precision=prec,
                                preferred_element_type=jnp.float32)      # (1, TM)
        ones = jnp.ones((1, xsq.shape[1]), jnp.float32)
        sumsq_t = lax.dot_general(ones, xsq, nt,
                                  precision=lax.Precision.HIGHEST,
                                  preferred_element_type=jnp.float32)    # (1, TM)
        inv_x_t = lax.rsqrt(jnp.maximum(sumsq_t, jnp.float32(1e-24)))
        o_ref[...] = (raw_t * inv_x_t).reshape(o_ref.shape).astype(o_ref.dtype)
    else:
        raw = lax.dot_general(a, w, nt, precision=prec,
                              preferred_element_type=jnp.float32)        # (TM, O)
        inv_x = lax.rsqrt(
            jnp.maximum(jnp.sum(xsq, axis=-1, keepdims=True),
                        jnp.float32(1e-24)))                             # (TM, 1)
        o_ref[...] = (raw * inv_x).astype(o_ref.dtype)


def normed_logistic_regression(
    x: jax.Array,
    weight: jax.Array,
    *,
    block_m: int | None = None,
    mxu_dtype=None,
) -> jax.Array:
    """x: (N, in_dim), weight: (out_dim, in_dim) -> logits (N, out_dim) f32."""
    n, d = x.shape
    o, d2 = weight.shape
    assert d == d2, "feature dims must match"

    # --- Weight normalized ONCE, outside the grid loop (exact F.normalize). ---
    w32 = weight.astype(jnp.float32)
    w_n = w32 / jnp.maximum(jnp.linalg.norm(w32, axis=1, keepdims=True),
                            jnp.float32(1e-12))
    if mxu_dtype is not None:
        w_n = w_n.astype(mxu_dtype)

    # --- Row-tile size: target ~4 MiB of x per grid step, multiple of 8. ---
    if block_m is None:
        row_bytes = max(1, d * x.dtype.itemsize)
        block_m = (4 << 20) // row_bytes
        block_m = int(min(8192, max(512, (block_m // 8) * 8)))
    tm = max(8, (min(block_m, ((n + 7) // 8) * 8) // 8) * 8)
    # v7x megacore: prefer >= 2 grid steps so the "parallel" axis can shard
    # across both TensorCores.
    if n > 16 and pl.cdiv(n, tm) < 2:
        tm = max(8, ((pl.cdiv(n, 2) + 7) // 8) * 8)
    n_tiles = pl.cdiv(n, tm)

    lane_dense = (o == 1)

    # Explicit scoped-VMEM budget: double-buffered x tile, in-kernel f32
    # temporaries, (double-buffered) weight + out tiles, plus headroom.
    # Capped at 40 MiB -- safe on v7x (64 MiB/TC), conservative on v5e/v6e.
    out_block_elems = tm if lane_dense else tm * o
    vmem_bytes = (2 * tm * d * x.dtype.itemsize
                  + 2 * tm * d * 4
                  + 2 * o * d * 4
                  + 2 * out_block_elems * 4
                  + (2 << 20))
    vmem_bytes = int(min(max(vmem_bytes, 8 << 20), 40 << 20))

    kernel = functools.partial(_normed_logreg_kernel,
                               mxu_dtype=mxu_dtype, lane_dense=lane_dense)

    if lane_dense:
        # Lane-dense output: (n_tiles, 1, TM); block = full last-two dims.
        out_shape = jax.ShapeDtypeStruct((n_tiles, 1, tm), jnp.float32)
        out_spec = pl.BlockSpec((1, 1, tm), lambda i: (i, 0, 0))
    else:
        out_shape = jax.ShapeDtypeStruct((n, o), jnp.float32)
        out_spec = pl.BlockSpec((tm, o), lambda i: (i, 0))
        # Note: if O grows large in production, tile O with a second grid axis
        # (tn multiple of 128) instead of keeping the whole (O, D) weight
        # resident, which also makes these stores unmasked.

    out = pl.pallas_call(
        kernel,
        out_shape=out_shape,
        grid=(n_tiles,),
        in_specs=[
            pl.BlockSpec((tm, d), lambda i: (i, 0)),   # streamed x row tile
            pl.BlockSpec((o, d), lambda i: (0, 0)),    # resident normalized w
        ],
        out_specs=out_spec,
        compiler_params=pltpu.CompilerParams(
            dimension_semantics=("parallel",),
            vmem_limit_bytes=vmem_bytes,
        ),
    )(x, w_n)

    if lane_dense:
        return out.reshape(n_tiles * tm, 1)[:n]
    return out


def init_weight(key, out_dim: int, in_dim: int) -> jax.Array:
    # nn.init.kaiming_uniform_(w, a=sqrt(5)) -> bound = 1 / sqrt(fan_in)
    bound = 1.0 / math.sqrt(in_dim)
    return jax.random.uniform(
        key, (out_dim, in_dim), dtype=jnp.float32, minval=-bound, maxval=bound
    )


def _ref(x, w):
    xn = x / jnp.maximum(jnp.linalg.norm(x, axis=1, keepdims=True), 1e-12)
    wn = w / jnp.maximum(jnp.linalg.norm(w, axis=1, keepdims=True), 1e-12)
    return xn @ wn.T


if __name__ == "__main__":
    key = jax.random.PRNGKey(0)
    k_x, k_w, k_x2, k_w2 = jax.random.split(key, 4)

    # Module-default shapes: (batch=8, in_dim=32) -> (8, out_dim=1).
    batch, in_dim, out_dim = 8, 32, 1
    x = jax.random.normal(k_x, (batch, in_dim), dtype=jnp.float32)
    weight = init_weight(k_w, out_dim, in_dim)

    logits = jax.block_until_ready(normed_logistic_regression(x, weight))
    assert logits.shape == (batch, out_dim)
    assert jnp.allclose(logits, _ref(x, weight), atol=1e-5, rtol=1e-5)

    # Multi-tile + ragged-N lane-dense path (out_dim == 1, N % TM != 0).
    x2 = jax.random.normal(k_x2, (300, in_dim), dtype=jnp.float32)
    logits2 = jax.block_until_ready(
        normed_logistic_regression(x2, weight, block_m=128))
    assert logits2.shape == (300, 1)
    assert jnp.allclose(logits2, _ref(x2, weight), atol=1e-5, rtol=1e-5)

    # Multi-class path (out_dim > 1) with a ragged last row tile.
    weight3 = init_weight(k_w2, 4, in_dim)
    logits3 = jax.block_until_ready(
        normed_logistic_regression(x2, weight3, block_m=128))
    assert logits3.shape == (300, 4)
    assert jnp.allclose(logits3, _ref(x2, weight3), atol=1e-5, rtol=1e-5)

    print("KERNEL_OK")
</pallas_src>

<mosaic_0001>
module attributes {stable_mosaic.version = 11 : i64} {
  func.func @_normed_logreg_kernel(%arg0: i32, %arg1: memref<8x32xf32, #tpu.memory_space<vmem>>, %arg2: memref<1x32xf32, #tpu.memory_space<vmem>>, %arg3: memref<1x1x8xf32, #tpu.memory_space<vmem>>) attributes {dimension_semantics = [#tpu.dimension_semantics<parallel>], iteration_bounds = array<i64: 1>, scalar_prefetch = 0 : i64, scratch_operands = 0 : i64, tpu.core_type = #tpu.core_type<tc>, window_params = [{transform_indices = @transform_0, window_bounds = array<i64: 8, 32>}, {pipeline_mode = #tpu.pipeline_mode<synchronous>, transform_indices = @transform_1, window_bounds = array<i64: 1, 32>}, {transform_indices = @transform_2, window_bounds = array<i64: 1, 1, 8>}]} {
    %c0 = arith.constant 0 : index
    %c0_0 = arith.constant 0 : index
    %0 = vector.load %arg1[%c0, %c0_0] : memref<8x32xf32, #tpu.memory_space<vmem>>, vector<8x32xf32>
    %c0_1 = arith.constant 0 : index
    %c0_2 = arith.constant 0 : index
    %1 = vector.load %arg2[%c0_1, %c0_2] : memref<1x32xf32, #tpu.memory_space<vmem>>, vector<1x32xf32>
    %2 = arith.mulf %0, %0 : vector<8x32xf32>
    %cst = arith.constant dense<0.000000e+00> : vector<1x8xf32>
    %3 = tpu.matmul %1, %0, %cst {dimension_numbers = #tpu.dot_dimension_numbers<[1], [1], [0], [0], [0, 0, 1, 0], [], []>, precision = #tpu.contract_precision<fp32>} : vector<1x32xf32>, vector<8x32xf32>, vector<1x8xf32> -> vector<1x8xf32>
    %cst_3 = arith.constant 1.000000e+00 : f32
    %4 = vector.broadcast %cst_3 : f32 to vector<1x32xf32>
    %cst_4 = arith.constant dense<0.000000e+00> : vector<1x8xf32>
    %5 = tpu.matmul %4, %2, %cst_4 {dimension_numbers = #tpu.dot_dimension_numbers<[1], [1], [0], [0], [0, 0, 1, 0], [], []>, precision = #tpu.contract_precision<fp32>} : vector<1x32xf32>, vector<8x32xf32>, vector<1x8xf32> -> vector<1x8xf32>
    %cst_5 = arith.constant 1.000000e-24 : f32
    %6 = vector.broadcast %cst_5 : f32 to vector<1x8xf32>
    %7 = arith.maximumf %5, %6 : vector<1x8xf32>
    %8 = math.rsqrt %7 : vector<1x8xf32>
    %9 = arith.mulf %3, %8 : vector<1x8xf32>
    %10 = vector.shape_cast %9 : vector<1x8xf32> to vector<1x1x8xf32>
    %c0_6 = arith.constant 0 : index
    %c0_7 = arith.constant 0 : index
    %c0_8 = arith.constant 0 : index
    %11 = vector.load %arg3[%c0_6, %c0_7, %c0_8] : memref<1x1x8xf32, #tpu.memory_space<vmem>>, vector<1x1x8xf32>
    tpu.vector_store %arg3[%c0_6, %c0_7, %c0_8], %10 {strides = array<i32>} : memref<1x1x8xf32, #tpu.memory_space<vmem>>, vector<1x1x8xf32>,
    return
  }
  func.func @transform_0(%arg0: i32) -> (i32, i32) {
    %c0_i32 = arith.constant 0 : i32
    %c0_i32_0 = arith.constant 0 : i32
    return %arg0, %c0_i32 : i32, i32
  }
  func.func @transform_1(%arg0: i32) -> (i32, i32) {
    %c0_i32 = arith.constant 0 : i32
    %c0_i32_0 = arith.constant 0 : i32
    %c0_i32_1 = arith.constant 0 : i32
    return %c0_i32, %c0_i32_0 : i32, i32
  }
  func.func @transform_2(%arg0: i32) -> (i32, i32, i32) {
    %c0_i32 = arith.constant 0 : i32
    %c0_i32_0 = arith.constant 0 : i32
    %c0_i32_1 = arith.constant 0 : i32
    return %arg0, %c0_i32, %c0_i32_0 : i32, i32, i32
  }
}

</mosaic_0001>

<llo_original>
// kernel: tpu_custom_call.1
$region0: #{tpu_custom_call.1}
  #allocation0 [shape = 'u32[]', space=smem, size = 0x4, offset = 0x4, fixed_abs, tag = 'smem constant byte address 0x4 - core index']
  #allocation1 [shape = 'u32[144,128]{1,0:T(1,128)}', space=vmem, size = 0x12000, scoped, tag = 'internal scratch']
  %s0 = inlined_call_operand.hbm [shape: f32[8,32], index: 0, kind: input, shape index: {}]
  %s1 = inlined_call_operand.vmem [shape: f32[1,32], index: 1, kind: input, shape index: {}]
  %s2 = inlined_call_operand.hbm [shape: f32[1,1,8], index: 2, kind: output, shape index: {}]
  %s3 = sld [smem:[#allocation0]]
  $region22: #{tpu_custom_call.1} parent=0
    _
  %s5 = ssub.s32 1, %s3
  %s6 = scalar_select 0, %s5, %s3
  $region1: #{tpu_custom_call.1} parent=0
    #allocation2 [shape = 'u8[4096]{0}', space=vmem, size = 0x1000, scoped, tag = 'input window, operand 0, single buffered']
    #allocation3 [shape = 's32[1]{0}', space=sflag, size = 0x4, scoped, tag = 'scoped memory for tpu_custom_call.1']
    #allocation4 [shape = 's32[1]{0}', space=sflag, size = 0x4, scoped, tag = 'scoped memory for tpu_custom_call.1']
    #allocation5 [shape = 'u8[512]{0}', space=vmem, size = 0x400, scoped, tag = 'output window, operand 0, single buffered']
    %7 = vsyncpa [#allocation3], 0
    %8 = vsyncpa [#allocation4], 0
    // Predicated region
    $region2: #{tpu_custom_call.1} parent=1 // pred_check
      _
    $region3: #{tpu_custom_call.1} parent=1 // pred_check_branch
      %10 = sbr.rel (0) target = $region5
    $region4: #{tpu_custom_call.1} parent=1 // pred_region
      %s12 = ssub.s32 128, 128
      %13 = vsyncadd [#allocation3], %s12
      %s15 = sshll.u32 [#allocation2], 4
      %s16 = int_to_ptr.vmem [resolvable:$true] %s15
      %18 = dma.hbm_to_vmem [thread:$0]  %s0, 128, %s16, [#allocation3]
    $region5: #{tpu_custom_call.1} parent=1 // pred_fallthru
      _
    // Predicated region
    $region6: #{tpu_custom_call.1} parent=1 // pred_check
      _
    $region7: #{tpu_custom_call.1} parent=1 // pred_check_branch
      %20 = sbr.rel (0) target = $region9
    $region8: #{tpu_custom_call.1} parent=1 // pred_region
      _
    $region9: #{tpu_custom_call.1} parent=1 // pred_fallthru
      _
    // Predicated region
    $region10: #{tpu_custom_call.1} parent=1 // pred_check
      _
    $region11: #{tpu_custom_call.1} parent=1 // pred_check_branch
      %22 = sbr.rel (0) target = $region13
    $region12: #{tpu_custom_call.1} parent=1 // pred_region
      %23 = dma.done [#allocation3], 128
    $region13: #{tpu_custom_call.1} parent=1 // pred_fallthru
      _
    %v24 = vld [vmem:[#allocation2] sm:$0xff]
    %v25 = vld [vmem:[%s1] sm:$0x1]
    %v26 = vmul.f32 %v24, %v24
    %vm27 = vcmask 261120
    %v29 = vsel %vm27, %v25, 0
    %v32 = vsel %vm27, %v24, 0
    %34 = vmatprep.subr.mxu0 0.0
    %v35 = vand.u32 %v32, 4294901760
    %36 = vmatpush1.xpose.msra.mxu0 %v35
    %37 = vmatprep.subr.mxu0 0.0
    %38 = vmatpush1.xpose.msra.mxu0 0.0
    %39 = vmatprep.subr.mxu0 0.0
    %40 = vmatpush1.xpose.msra.mxu0 0.0
    %41 = vmatprep.subr.mxu0 0.0
    %42 = vmatpush1.xpose.msra.mxu0 0.0
    %43 = vmatprep.subr.mxu0 0.0
    %44 = vmatpush1.xpose.msra.mxu0 0.0
    %45 = vmatprep.subr.mxu0 0.0
    %46 = vmatpush1.xpose.msra.mxu0 0.0
    %47 = vmatprep.subr.mxu0 0.0
    %48 = vmatpush1.xpose.msra.mxu0 0.0
    %49 = vmatprep.subr.mxu0 0.0
    %50 = vmatpush1.xpose.msra.mxu0 0.0
    %51 = vmatprep.subr.mxu0 0.0
    %52 = vmatpush1.xpose.msra.mxu0 0.0
    %53 = vmatprep.subr.mxu0 0.0
    %54 = vmatpush1.xpose.msra.mxu0 0.0
    %55 = vmatprep.subr.mxu0 0.0
    %56 = vmatpush1.xpose.msra.mxu0 0.0
    %57 = vmatprep.subr.mxu0 0.0
    %58 = vmatpush1.xpose.msra.mxu0 0.0
    %59 = vmatprep.subr.mxu0 0.0
    %60 = vmatpush1.xpose.msra.mxu0 0.0
    %61 = vmatprep.subr.mxu0 0.0
    %62 = vmatpush1.xpose.msra.mxu0 0.0
    %63 = vmatprep.subr.mxu0 0.0
    %64 = vmatpush1.xpose.msra.mxu0 0.0
    %65 = vmatprep.subr.mxu0 0.0
    %66 = vmatpush1.xpose.msra.mxu0 0.0
    %67 = vmatprep.subr.mxu0 0.0
    %68 = vmatpush1.xpose.msra.mxu0 0.0
    %69 = vmatprep.subr.mxu0 0.0
    %70 = vmatpush1.xpose.msra.mxu0 0.0
    %71 = vmatprep.subr.mxu0 0.0
    %72 = vmatpush1.xpose.msra.mxu0 0.0
    %73 = vmatprep.subr.mxu0 0.0
    %74 = vmatpush1.xpose.msra.mxu0 0.0
    %75 = vmatprep.subr.mxu0 0.0
    %76 = vmatpush1.xpose.msra.mxu0 0.0
    %77 = vmatprep.subr.mxu0 0.0
    %78 = vmatpush1.xpose.msra.mxu0 0.0
    %79 = vmatprep.subr.mxu0 0.0
    %80 = vmatpush1.xpose.msra.mxu0 0.0
    %81 = vmatprep.subr.mxu0 0.0
    %82 = vmatpush1.xpose.msra.mxu0 0.0
    %83 = vmatprep.subr.mxu0 0.0
    %84 = vmatpush1.xpose.msra.mxu0 0.0
    %85 = vmatprep.subr.mxu0 0.0
    %86 = vmatpush1.xpose.msra.mxu0 0.0
    %87 = vmatprep.subr.mxu0 0.0
    %88 = vmatpush1.xpose.msra.mxu0 0.0
    %89 = vmatprep.subr.mxu0 0.0
    %90 = vmatpush1.xpose.msra.mxu0 0.0
    %91 = vmatprep.subr.mxu0 0.0
    %92 = vmatpush1.xpose.msra.mxu0 0.0
    %93 = vmatprep.subr.mxu0 0.0
    %94 = vmatpush1.xpose.msra.mxu0 0.0
    %95 = vmatprep.subr.mxu0 0.0
    %96 = vmatpush1.xpose.msra.mxu0 0.0
    %97 = vmatprep.subr.mxu0 0.0
    %98 = vmatpush1.xpose.msra.mxu0 0.0
    %99 = vmatprep.mubr.f32.mxu0 0.0
    %v100 = vand.u32 %v29, 4294901760
    %v101 = vsub.f32 %v29, %v100
    %v102 = vand.u32 %v101, 4294901760
    %v103 = vsub.f32 %v101, %v102
    %v104 = vand.u32 %v103, 4294901760
    %105 = vmatmul.mubr.f32.gmra.mrb[0].mxu0 %v104
    %v106 = vpop.f32.mrb[0].mxu0
    %v107 = vadd.f32 0.0, %v106
    %v108 = vpop.f32.mrb[0].mxu0
    %109 = vdwg.mxu0
    %110 = vmatprep.subr.mxu0 0.0
    %v111 = vand.u32 %v32, 4294901760
    %v112 = vsub.f32 %v32, %v111
    %v113 = vand.u32 %v112, 4294901760
    %v114 = vsub.f32 %v112, %v113
    %v115 = vand.u32 %v114, 4294901760
    %116 = vmatpush1.xpose.msra.mxu0 %v115
    %117 = vmatprep.subr.mxu0 0.0
    %118 = vmatpush1.xpose.msra.mxu0 0.0
    %119 = vmatprep.subr.mxu0 0.0
    %120 = vmatpush1.xpose.msra.mxu0 0.0
    %121 = vmatprep.subr.mxu0 0.0
    %122 = vmatpush1.xpose.msra.mxu0 0.0
    %123 = vmatprep.subr.mxu0 0.0
    %124 = vmatpush1.xpose.msra.mxu0 0.0
    %125 = vmatprep.subr.mxu0 0.0
    %126 = vmatpush1.xpose.msra.mxu0 0.0
    %127 = vmatprep.subr.mxu0 0.0
    %128 = vmatpush1.xpose.msra.mxu0 0.0
    %129 = vmatprep.subr.mxu0 0.0
    %130 = vmatpush1.xpose.msra.mxu0 0.0
    %131 = vmatprep.subr.mxu0 0.0
    %132 = vmatpush1.xpose.msra.mxu0 0.0
    %133 = vmatprep.subr.mxu0 0.0
    %134 = vmatpush1.xpose.msra.mxu0 0.0
    %135 = vmatprep.subr.mxu0 0.0
    %136 = vmatpush1.xpose.msra.mxu0 0.0
    %137 = vmatprep.subr.mxu0 0.0
    %138 = vmatpush1.xpose.msra.mxu0 0.0
    %139 = vmatprep.subr.mxu0 0.0
    %140 = vmatpush1.xpose.msra.mxu0 0.0
    %141 = vmatprep.subr.mxu0 0.0
    %142 = vmatpush1.xpose.msra.mxu0 0.0
    %143 = vmatprep.subr.mxu0 0.0
    %144 = vmatpush1.xpose.msra.mxu0 0.0
    %145 = vmatprep.subr.mxu0 0.0
    %146 = vmatpush1.xpose.msra.mxu0 0.0
    %147 = vmatprep.subr.mxu0 0.0
    %148 = vmatpush1.xpose.msra.mxu0 0.0
    %149 = vmatprep.subr.mxu0 0.0
    %150 = vmatpush1.xpose.msra.mxu0 0.0
    %151 = vmatprep.subr.mxu0 0.0
    %152 = vmatpush1.xpose.msra.mxu0 0.0
    %153 = vmatprep.subr.mxu0 0.0
    %154 = vmatpush1.xpose.msra.mxu0 0.0
    %155 = vmatprep.subr.mxu0 0.0
    %156 = vmatpush1.xpose.msra.mxu0 0.0
    %157 = vmatprep.subr.mxu0 0.0
    %158 = vmatpush1.xpose.msra.mxu0 0.0
    %159 = vmatprep.subr.mxu0 0.0
    %160 = vmatpush1.xpose.msra.mxu0 0.0
    %161 = vmatprep.subr.mxu0 0.0
    %162 = vmatpush1.xpose.msra.mxu0 0.0
    %163 = vmatprep.subr.mxu0 0.0
    %164 = vmatpush1.xpose.msra.mxu0 0.0
    %165 = vmatprep.subr.mxu0 0.0
    %166 = vmatpush1.xpose.msra.mxu0 0.0
    %167 = vmatprep.subr.mxu0 0.0
    %168 = vmatpush1.xpose.msra.mxu0 0.0
    %169 = vmatprep.subr.mxu0 0.0
    %170 = vmatpush1.xpose.msra.mxu0 0.0
    %171 = vmatprep.subr.mxu0 0.0
    %172 = vmatpush1.xpose.msra.mxu0 0.0
    %173 = vmatprep.subr.mxu0 0.0
    %174 = vmatpush1.xpose.msra.mxu0 0.0
    %175 = vmatprep.subr.mxu0 0.0
    %176 = vmatpush1.xpose.msra.mxu0 0.0
    %177 = vmatprep.subr.mxu0 0.0
    %178 = vmatpush1.xpose.msra.mxu0 0.0
    %179 = vmatprep.mubr.f32.mxu0 0.0
    %v180 = vand.u32 %v29, 4294901760
    %181 = vmatmul.mubr.f32.gmra.mrb[0].mxu0 %v180
    %v182 = vpop.f32.mrb[0].mxu0
    %v183 = vadd.f32 %v107, %v182
    %v184 = vpop.f32.mrb[0].mxu0
    %185 = vdwg.mxu0
    %186 = vmatprep.subr.mxu0 0.0
    %v187 = vand.u32 %v32, 4294901760
    %v188 = vsub.f32 %v32, %v187
    %189 = vmatpush1.xpose.msra.mxu0 %v188
    %190 = vmatprep.subr.mxu0 0.0
    %191 = vmatpush1.xpose.msra.mxu0 0.0
    %192 = vmatprep.subr.mxu0 0.0
    %193 = vmatpush1.xpose.msra.mxu0 0.0
    %194 = vmatprep.subr.mxu0 0.0
    %195 = vmatpush1.xpose.msra.mxu0 0.0
    %196 = vmatprep.subr.mxu0 0.0
    %197 = vmatpush1.xpose.msra.mxu0 0.0
    %198 = vmatprep.subr.mxu0 0.0
    %199 = vmatpush1.xpose.msra.mxu0 0.0
    %200 = vmatprep.subr.mxu0 0.0
    %201 = vmatpush1.xpose.msra.mxu0 0.0
    %202 = vmatprep.subr.mxu0 0.0
    %203 = vmatpush1.xpose.msra.mxu0 0.0
    %204 = vmatprep.subr.mxu0 0.0
    %205 = vmatpush1.xpose.msra.mxu0 0.0
    %206 = vmatprep.subr.mxu0 0.0
    %207 = vmatpush1.xpose.msra.mxu0 0.0
    %208 = vmatprep.subr.mxu0 0.0
    %209 = vmatpush1.xpose.msra.mxu0 0.0
    %210 = vmatprep.subr.mxu0 0.0
    %211 = vmatpush1.xpose.msra.mxu0 0.0
    %212 = vmatprep.subr.mxu0 0.0
    %213 = vmatpush1.xpose.msra.mxu0 0.0
    %214 = vmatprep.subr.mxu0 0.0
    %215 = vmatpush1.xpose.msra.mxu0 0.0
    %216 = vmatprep.subr.mxu0 0.0
    %217 = vmatpush1.xpose.msra.mxu0 0.0
    %218 = vmatprep.subr.mxu0 0.0
    %219 = vmatpush1.xpose.msra.mxu0 0.0
    %220 = vmatprep.subr.mxu0 0.0
    %221 = vmatpush1.xpose.msra.mxu0 0.0
    %222 = vmatprep.subr.mxu0 0.0
    %223 = vmatpush1.xpose.msra.mxu0 0.0
    %224 = vmatprep.subr.mxu0 0.0
    %225 = vmatpush1.xpose.msra.mxu0 0.0
    %226 = vmatprep.subr.mxu0 0.0
    %227 = vmatpush1.xpose.msra.mxu0 0.0
    %228 = vmatprep.subr.mxu0 0.0
    %229 = vmatpush1.xpose.msra.mxu0 0.0
    %230 = vmatprep.subr.mxu0 0.0
    %231 = vmatpush1.xpose.msra.mxu0 0.0
    %232 = vmatprep.subr.mxu0 0.0
    %233 = vmatpush1.xpose.msra.mxu0 0.0
    %234 = vmatprep.subr.mxu0 0.0
    %235 = vmatpush1.xpose.msra.mxu0 0.0
    %236 = vmatprep.subr.mxu0 0.0
    %237 = vmatpush1.xpose.msra.mxu0 0.0
    %238 = vmatprep.subr.mxu0 0.0
    %239 = vmatpush1.xpose.msra.mxu0 0.0
    %240 = vmatprep.subr.mxu0 0.0
    %241 = vmatpush1.xpose.msra.mxu0 0.0
    %242 = vmatprep.subr.mxu0 0.0
    %243 = vmatpush1.xpose.msra.mxu0 0.0
    %244 = vmatprep.subr.mxu0 0.0
    %245 = vmatpush1.xpose.msra.mxu0 0.0
    %246 = vmatprep.subr.mxu0 0.0
    %247 = vmatpush1.xpose.msra.mxu0 0.0
    %248 = vmatprep.subr.mxu0 0.0
    %249 = vmatpush1.xpose.msra.mxu0 0.0
    %250 = vmatprep.subr.mxu0 0.0
    %251 = vmatpush1.xpose.msra.mxu0 0.0
    %252 = vmatprep.mubr.f32.mxu0 0.0
    %v253 = vand.u32 %v29, 4294901760
    %v254 = vsub.f32 %v29, %v253
    %255 = vmatmul.mubr.f32.gmra.mrb[0].mxu0 %v254
    %v256 = vpop.f32.mrb[0].mxu0
    %v257 = vadd.f32 %v183, %v256
    %v258 = vpop.f32.mrb[0].mxu0
    %259 = vdwg.mxu0
    %260 = vmatprep.subr.mxu0 0.0
    %v261 = vand.u32 %v32, 4294901760
    %262 = vmatpush1.xpose.msra.mxu0 %v261
    %263 = vmatprep.subr.mxu0 0.0
    %264 = vmatpush1.xpose.msra.mxu0 0.0
    %265 = vmatprep.subr.mxu0 0.0
    %266 = vmatpush1.xpose.msra.mxu0 0.0
    %267 = vmatprep.subr.mxu0 0.0
    %268 = vmatpush1.xpose.msra.mxu0 0.0
    %269 = vmatprep.subr.mxu0 0.0
    %270 = vmatpush1.xpose.msra.mxu0 0.0
    %271 = vmatprep.subr.mxu0 0.0
    %272 = vmatpush1.xpose.msra.mxu0 0.0
    %273 = vmatprep.subr.mxu0 0.0
    %274 = vmatpush1.xpose.msra.mxu0 0.0
    %275 = vmatprep.subr.mxu0 0.0
    %276 = vmatpush1.xpose.msra.mxu0 0.0
    %277 = vmatprep.subr.mxu0 0.0
    %278 = vmatpush1.xpose.msra.mxu0 0.0
    %279 = vmatprep.subr.mxu0 0.0
    %280 = vmatpush1.xpose.msra.mxu0 0.0
    %281 = vmatprep.subr.mxu0 0.0
    %282 = vmatpush1.xpose.msra.mxu0 0.0
    %283 = vmatprep.subr.mxu0 0.0
    %284 = vmatpush1.xpose.msra.mxu0 0.0
    %285 = vmatprep.subr.mxu0 0.0
    %286 = vmatpush1.xpose.msra.mxu0 0.0
    %287 = vmatprep.subr.mxu0 0.0
    %288 = vmatpush1.xpose.msra.mxu0 0.0
    %289 = vmatprep.subr.mxu0 0.0
    %290 = vmatpush1.xpose.msra.mxu0 0.0
    %291 = vmatprep.subr.mxu0 0.0
    %292 = vmatpush1.xpose.msra.mxu0 0.0
    %293 = vmatprep.subr.mxu0 0.0
    %294 = vmatpush1.xpose.msra.mxu0 0.0
    %295 = vmatprep.subr.mxu0 0.0
    %296 = vmatpush1.xpose.msra.mxu0 0.0
    %297 = vmatprep.subr.mxu0 0.0
    %298 = vmatpush1.xpose.msra.mxu0 0.0
    %299 = vmatprep.subr.mxu0 0.0
    %300 = vmatpush1.xpose.msra.mxu0 0.0
    %301 = vmatprep.subr.mxu0 0.0
    %302 = vmatpush1.xpose.msra.mxu0 0.0
    %303 = vmatprep.subr.mxu0 0.0
    %304 = vmatpush1.xpose.msra.mxu0 0.0
    %305 = vmatprep.subr.mxu0 0.0
    %306 = vmatpush1.xpose.msra.mxu0 0.0
    %307 = vmatprep.subr.mxu0 0.0
    %308 = vmatpush1.xpose.msra.mxu0 0.0
    %309 = vmatprep.subr.mxu0 0.0
    %310 = vmatpush1.xpose.msra.mxu0 0.0
    %311 = vmatprep.subr.mxu0 0.0
    %312 = vmatpush1.xpose.msra.mxu0 0.0
    %313 = vmatprep.subr.mxu0 0.0
    %314 = vmatpush1.xpose.msra.mxu0 0.0
    %315 = vmatprep.subr.mxu0 0.0
    %316 = vmatpush1.xpose.msra.mxu0 0.0
    %317 = vmatprep.subr.mxu0 0.0
    %318 = vmatpush1.xpose.msra.mxu0 0.0
    %319 = vmatprep.subr.mxu0 0.0
    %320 = vmatpush1.xpose.msra.mxu0 0.0
    %321 = vmatprep.subr.mxu0 0.0
    %322 = vmatpush1.xpose.msra.mxu0 0.0
    %323 = vmatprep.subr.mxu0 0.0
    %324 = vmatpush1.xpose.msra.mxu0 0.0
    %325 = vmatprep.mubr.f32.mxu0 0.0
    %v326 = vand.u32 %v29, 4294901760
    %v327 = vsub.f32 %v29, %v326
    %v328 = vand.u32 %v327, 4294901760
    %329 = vmatmul.mubr.f32.gmra.mrb[0].mxu0 %v328
    %v330 = vpop.f32.mrb[0].mxu0
    %v331 = vadd.f32 %v257, %v330
    %v332 = vpop.f32.mrb[0].mxu0
    %333 = vdwg.mxu0
    %334 = vmatprep.subr.mxu0 0.0
    %v335 = vand.u32 %v32, 4294901760
    %v336 = vsub.f32 %v32, %v335
    %v337 = vand.u32 %v336, 4294901760
    %338 = vmatpush1.xpose.msra.mxu0 %v337
    %339 = vmatprep.subr.mxu0 0.0
    %340 = vmatpush1.xpose.msra.mxu0 0.0
    %341 = vmatprep.subr.mxu0 0.0
    %342 = vmatpush1.xpose.msra.mxu0 0.0
    %343 = vmatprep.subr.mxu0 0.0
    %344 = vmatpush1.xpose.msra.mxu0 0.0
    %345 = vmatprep.subr.mxu0 0.0
    %346 = vmatpush1.xpose.msra.mxu0 0.0
    %347 = vmatprep.subr.mxu0 0.0
    %348 = vmatpush1.xpose.msra.mxu0 0.0
    %349 = vmatprep.subr.mxu0 0.0
    %350 = vmatpush1.xpose.msra.mxu0 0.0
    %351 = vmatprep.subr.mxu0 0.0
    %352 = vmatpush1.xpose.msra.mxu0 0.0
    %353 = vmatprep.subr.mxu0 0.0
    %354 = vmatpush1.xpose.msra.mxu0 0.0
    %355 = vmatprep.subr.mxu0 0.0
    %356 = vmatpush1.xpose.msra.mxu0 0.0
    %357 = vmatprep.subr.mxu0 0.0
    %358 = vmatpush1.xpose.msra.mxu0 0.0
    %359 = vmatprep.subr.mxu0 0.0
    %360 = vmatpush1.xpose.msra.mxu0 0.0
    %361 = vmatprep.subr.mxu0 0.0
    %362 = vmatpush1.xpose.msra.mxu0 0.0
    %363 = vmatprep.subr.mxu0 0.0
    %364 = vmatpush1.xpose.msra.mxu0 0.0
    %365 = vmatprep.subr.mxu0 0.0
    %366 = vmatpush1.xpose.msra.mxu0 0.0
    %367 = vmatprep.subr.mxu0 0.0
    %368 = vmatpush1.xpose.msra.mxu0 0.0
    %369 = vmatprep.subr.mxu0 0.0
    %370 = vmatpush1.xpose.msra.mxu0 0.0
    %371 = vmatprep.subr.mxu0 0.0
    %372 = vmatpush1.xpose.msra.mxu0 0.0
    %373 = vmatprep.subr.mxu0 0.0
    %374 = vmatpush1.xpose.msra.mxu0 0.0
    %375 = vmatprep.subr.mxu0 0.0
    %376 = vmatpush1.xpose.msra.mxu0 0.0
    %377 = vmatprep.subr.mxu0 0.0
    %378 = vmatpush1.xpose.msra.mxu0 0.0
    %379 = vmatprep.subr.mxu0 0.0
    %380 = vmatpush1.xpose.msra.mxu0 0.0
    %381 = vmatprep.subr.mxu0 0.0
    %382 = vmatpush1.xpose.msra.mxu0 0.0
    %383 = vmatprep.subr.mxu0 0.0
    %384 = vmatpush1.xpose.msra.mxu0 0.0
    %385 = vmatprep.subr.mxu0 0.0
    %386 = vmatpush1.xpose.msra.mxu0 0.0
    %387 = vmatprep.subr.mxu0 0.0
    %388 = vmatpush1.xpose.msra.mxu0 0.0
    %389 = vmatprep.subr.mxu0 0.0
    %390 = vmatpush1.xpose.msra.mxu0 0.0
    %391 = vmatprep.subr.mxu0 0.0
    %392 = vmatpush1.xpose.msra.mxu0 0.0
    %393 = vmatprep.subr.mxu0 0.0
    %394 = vmatpush1.xpose.msra.mxu0 0.0
    %395 = vmatprep.subr.mxu0 0.0
    %396 = vmatpush1.xpose.msra.mxu0 0.0
    %397 = vmatprep.subr.mxu0 0.0
    %398 = vmatpush1.xpose.msra.mxu0 0.0
    %399 = vmatprep.subr.mxu0 0.0
    %400 = vmatpush1.xpose.msra.mxu0 0.0
    %401 = vmatprep.mubr.f32.mxu0 0.0
    %v402 = vand.u32 %v29, 4294901760
    %403 = vmatmul.mubr.f32.gmra.mrb[0].mxu0 %v402
    %v404 = vpop.f32.mrb[0].mxu0
    %v405 = vadd.f32 %v331, %v404
    %v406 = vpop.f32.mrb[0].mxu0
    %407 = vdwg.mxu0
    %408 = vmatprep.subr.mxu0 0.0
    %v409 = vand.u32 %v32, 4294901760
    %410 = vmatpush1.xpose.msra.mxu0 %v409
    %411 = vmatprep.subr.mxu0 0.0
    %412 = vmatpush1.xpose.msra.mxu0 0.0
    %413 = vmatprep.subr.mxu0 0.0
    %414 = vmatpush1.xpose.msra.mxu0 0.0
    %415 = vmatprep.subr.mxu0 0.0
    %416 = vmatpush1.xpose.msra.mxu0 0.0
    %417 = vmatprep.subr.mxu0 0.0
    %418 = vmatpush1.xpose.msra.mxu0 0.0
    %419 = vmatprep.subr.mxu0 0.0
    %420 = vmatpush1.xpose.msra.mxu0 0.0
    %421 = vmatprep.subr.mxu0 0.0
    %422 = vmatpush1.xpose.msra.mxu0 0.0
    %423 = vmatprep.subr.mxu0 0.0
    %424 = vmatpush1.xpose.msra.mxu0 0.0
    %425 = vmatprep.subr.mxu0 0.0
    %426 = vmatpush1.xpose.msra.mxu0 0.0
    %427 = vmatprep.subr.mxu0 0.0
    %428 = vmatpush1.xpose.msra.mxu0 0.0
    %429 = vmatprep.subr.mxu0 0.0
    %430 = vmatpush1.xpose.msra.mxu0 0.0
    %431 = vmatprep.subr.mxu0 0.0
    %432 = vmatpush1.xpose.msra.mxu0 0.0
    %433 = vmatprep.subr.mxu0 0.0
    %434 = vmatpush1.xpose.msra.mxu0 0.0
    %435 = vmatprep.subr.mxu0 0.0
    %436 = vmatpush1.xpose.msra.mxu0 0.0
    %437 = vmatprep.subr.mxu0 0.0
    %438 = vmatpush1.xpose.msra.mxu0 0.0
    %439 = vmatprep.subr.mxu0 0.0
    %440 = vmatpush1.xpose.msra.mxu0 0.0
    %441 = vmatprep.subr.mxu0 0.0
    %442 = vmatpush1.xpose.msra.mxu0 0.0
    %443 = vmatprep.subr.mxu0 0.0
    %444 = vmatpush1.xpose.msra.mxu0 0.0
    %445 = vmatprep.subr.mxu0 0.0
    %446 = vmatpush1.xpose.msra.mxu0 0.0
    %447 = vmatprep.subr.mxu0 0.0
    %448 = vmatpush1.xpose.msra.mxu0 0.0
    %449 = vmatprep.subr.mxu0 0.0
    %450 = vmatpush1.xpose.msra.mxu0 0.0
    %451 = vmatprep.subr.mxu0 0.0
    %452 = vmatpush1.xpose.msra.mxu0 0.0
    %453 = vmatprep.subr.mxu0 0.0
    %454 = vmatpush1.xpose.msra.mxu0 0.0
    %455 = vmatprep.subr.mxu0 0.0
    %456 = vmatpush1.xpose.msra.mxu0 0.0
    %457 = vmatprep.subr.mxu0 0.0
    %458 = vmatpush1.xpose.msra.mxu0 0.0
    %459 = vmatprep.subr.mxu0 0.0
    %460 = vmatpush1.xpose.msra.mxu0 0.0
    %461 = vmatprep.subr.mxu0 0.0
    %462 = vmatpush1.xpose.msra.mxu0 0.0
    %463 = vmatprep.subr.mxu0 0.0
    %464 = vmatpush1.xpose.msra.mxu0 0.0
    %465 = vmatprep.subr.mxu0 0.0
    %466 = vmatpush1.xpose.msra.mxu0 0.0
    %467 = vmatprep.subr.mxu0 0.0
    %468 = vmatpush1.xpose.msra.mxu0 0.0
    %469 = vmatprep.subr.mxu0 0.0
    %470 = vmatpush1.xpose.msra.mxu0 0.0
    %471 = vmatprep.subr.mxu0 0.0
    %472 = vmatpush1.xpose.msra.mxu0 0.0
    %473 = vmatprep.mubr.f32.mxu0 0.0
    %v474 = vand.u32 %v29, 4294901760
    %475 = vmatmul.mubr.f32.gmra.mrb[0].mxu0 %v474
    %v476 = vpop.f32.mrb[0].mxu0
    %v477 = vadd.f32 %v405, %v476
    %v478 = vpop.f32.mrb[0].mxu0
    %479 = vdwg.mxu0
    %v481 = vsel %vm27, 1.0, 0
    %v484 = vsel %vm27, %v26, 0
    %486 = vmatprep.subr.mxu0 0.0
    %v487 = vand.u32 %v484, 4294901760
    %488 = vmatpush1.xpose.msra.mxu0 %v487
    %489 = vmatprep.subr.mxu0 0.0
    %490 = vmatpush1.xpose.msra.mxu0 0.0
    %491 = vmatprep.subr.mxu0 0.0
    %492 = vmatpush1.xpose.msra.mxu0 0.0
    %493 = vmatprep.subr.mxu0 0.0
    %494 = vmatpush1.xpose.msra.mxu0 0.0
    %495 = vmatprep.subr.mxu0 0.0
    %496 = vmatpush1.xpose.msra.mxu0 0.0
    %497 = vmatprep.subr.mxu0 0.0
    %498 = vmatpush1.xpose.msra.mxu0 0.0
    %499 = vmatprep.subr.mxu0 0.0
    %500 = vmatpush1.xpose.msra.mxu0 0.0
    %501 = vmatprep.subr.mxu0 0.0
    %502 = vmatpush1.xpose.msra.mxu0 0.0
    %503 = vmatprep.subr.mxu0 0.0
    %504 = vmatpush1.xpose.msra.mxu0 0.0
    %505 = vmatprep.subr.mxu0 0.0
    %506 = vmatpush1.xpose.msra.mxu0 0.0
    %507 = vmatprep.subr.mxu0 0.0
    %508 = vmatpush1.xpose.msra.mxu0 0.0
    %509 = vmatprep.subr.mxu0 0.0
    %510 = vmatpush1.xpose.msra.mxu0 0.0
    %511 = vmatprep.subr.mxu0 0.0
    %512 = vmatpush1.xpose.msra.mxu0 0.0
    %513 = vmatprep.subr.mxu0 0.0
    %514 = vmatpush1.xpose.msra.mxu0 0.0
    %515 = vmatprep.subr.mxu0 0.0
    %516 = vmatpush1.xpose.msra.mxu0 0.0
    %517 = vmatprep.subr.mxu0 0.0
    %518 = vmatpush1.xpose.msra.mxu0 0.0
    %519 = vmatprep.subr.mxu0 0.0
    %520 = vmatpush1.xpose.msra.mxu0 0.0
    %521 = vmatprep.subr.mxu0 0.0
    %522 = vmatpush1.xpose.msra.mxu0 0.0
    %523 = vmatprep.subr.mxu0 0.0
    %524 = vmatpush1.xpose.msra.mxu0 0.0
    %525 = vmatprep.subr.mxu0 0.0
    %526 = vmatpush1.xpose.msra.mxu0 0.0
    %527 = vmatprep.subr.mxu0 0.0
    %528 = vmatpush1.xpose.msra.mxu0 0.0
    %529 = vmatprep.subr.mxu0 0.0
    %530 = vmatpush1.xpose.msra.mxu0 0.0
    %531 = vmatprep.subr.mxu0 0.0
    %532 = vmatpush1.xpose.msra.mxu0 0.0
    %533 = vmatprep.subr.mxu0 0.0
    %534 = vmatpush1.xpose.msra.mxu0 0.0
    %535 = vmatprep.subr.mxu0 0.0
    %536 = vmatpush1.xpose.msra.mxu0 0.0
    %537 = vmatprep.subr.mxu0 0.0
    %538 = vmatpush1.xpose.msra.mxu0 0.0
    %539 = vmatprep.subr.mxu0 0.0
    %540 = vmatpush1.xpose.msra.mxu0 0.0
    %541 = vmatprep.subr.mxu0 0.0
    %542 = vmatpush1.xpose.msra.mxu0 0.0
    %543 = vmatprep.subr.mxu0 0.0
    %544 = vmatpush1.xpose.msra.mxu0 0.0
    %545 = vmatprep.subr.mxu0 0.0
    %546 = vmatpush1.xpose.msra.mxu0 0.0
    %547 = vmatprep.subr.mxu0 0.0
    %548 = vmatpush1.xpose.msra.mxu0 0.0
    %549 = vmatprep.subr.mxu0 0.0
    %550 = vmatpush1.xpose.msra.mxu0 0.0
    %551 = vmatprep.mubr.f32.mxu0 0.0
    %v552 = vand.u32 %v481, 4294901760
    %v553 = vsub.f32 %v481, %v552
    %v554 = vand.u32 %v553, 4294901760
    %v555 = vsub.f32 %v553, %v554
    %v556 = vand.u32 %v555, 4294901760
    %557 = vmatmul.mubr.f32.gmra.mrb[0].mxu0 %v556
    %v558 = vpop.f32.mrb[0].mxu0
    %v559 = vadd.f32 0.0, %v558
    %v560 = vpop.f32.mrb[0].mxu0
    %561 = vdwg.mxu0
    %562 = vmatprep.subr.mxu0 0.0
    %v563 = vand.u32 %v484, 4294901760
    %v564 = vsub.f32 %v484, %v563
    %v565 = vand.u32 %v564, 4294901760
    %v566 = vsub.f32 %v564, %v565
    %v567 = vand.u32 %v566, 4294901760
    %568 = vmatpush1.xpose.msra.mxu0 %v567
    %569 = vmatprep.subr.mxu0 0.0
    %570 = vmatpush1.xpose.msra.mxu0 0.0
    %571 = vmatprep.subr.mxu0 0.0
    %572 = vmatpush1.xpose.msra.mxu0 0.0
    %573 = vmatprep.subr.mxu0 0.0
    %574 = vmatpush1.xpose.msra.mxu0 0.0
    %575 = vmatprep.subr.mxu0 0.0
    %576 = vmatpush1.xpose.msra.mxu0 0.0
    %577 = vmatprep.subr.mxu0 0.0
    %578 = vmatpush1.xpose.msra.mxu0 0.0
    %579 = vmatprep.subr.mxu0 0.0
    %580 = vmatpush1.xpose.msra.mxu0 0.0
    %581 = vmatprep.subr.mxu0 0.0
    %582 = vmatpush1.xpose.msra.mxu0 0.0
    %583 = vmatprep.subr.mxu0 0.0
    %584 = vmatpush1.xpose.msra.mxu0 0.0
    %585 = vmatprep.subr.mxu0 0.0
    %586 = vmatpush1.xpose.msra.mxu0 0.0
    %587 = vmatprep.subr.mxu0 0.0
    %588 = vmatpush1.xpose.msra.mxu0 0.0
    %589 = vmatprep.subr.mxu0 0.0
    %590 = vmatpush1.xpose.msra.mxu0 0.0
    %591 = vmatprep.subr.mxu0 0.0
    %592 = vmatpush1.xpose.msra.mxu0 0.0
    %593 = vmatprep.subr.mxu0 0.0
    %594 = vmatpush1.xpose.msra.mxu0 0.0
    %595 = vmatprep.subr.mxu0 0.0
    %596 = vmatpush1.xpose.msra.mxu0 0.0
    %597 = vmatprep.subr.mxu0 0.0
    %598 = vmatpush1.xpose.msra.mxu0 0.0
    %599 = vmatprep.subr.mxu0 0.0
    %600 = vmatpush1.xpose.msra.mxu0 0.0
    %601 = vmatprep.subr.mxu0 0.0
    %602 = vmatpush1.xpose.msra.mxu0 0.0
    %603 = vmatprep.subr.mxu0 0.0
    %604 = vmatpush1.xpose.msra.mxu0 0.0
    %605 = vmatprep.subr.mxu0 0.0
    %606 = vmatpush1.xpose.msra.mxu0 0.0
    %607 = vmatprep.subr.mxu0 0.0
    %608 = vmatpush1.xpose.msra.mxu0 0.0
    %609 = vmatprep.subr.mxu0 0.0
    %610 = vmatpush1.xpose.msra.mxu0 0.0
    %611 = vmatprep.subr.mxu0 0.0
    %612 = vmatpush1.xpose.msra.mxu0 0.0
    %613 = vmatprep.subr.mxu0 0.0
    %614 = vmatpush1.xpose.msra.mxu0 0.0
    %615 = vmatprep.subr.mxu0 0.0
    %616 = vmatpush1.xpose.msra.mxu0 0.0
    %617 = vmatprep.subr.mxu0 0.0
    %618 = vmatpush1.xpose.msra.mxu0 0.0
    %619 = vmatprep.subr.mxu0 0.0
    %620 = vmatpush1.xpose.msra.mxu0 0.0
    %621 = vmatprep.subr.mxu0 0.0
    %622 = vmatpush1.xpose.msra.mxu0 0.0
    %623 = vmatprep.subr.mxu0 0.0
    %624 = vmatpush1.xpose.msra.mxu0 0.0
    %625 = vmatprep.subr.mxu0 0.0
    %626 = vmatpush1.xpose.msra.mxu0 0.0
    %627 = vmatprep.subr.mxu0 0.0
    %628 = vmatpush1.xpose.msra.mxu0 0.0
    %629 = vmatprep.subr.mxu0 0.0
    %630 = vmatpush1.xpose.msra.mxu0 0.0
    %631 = vmatprep.mubr.f32.mxu0 0.0
    %v632 = vand.u32 %v481, 4294901760
    %633 = vmatmul.mubr.f32.gmra.mrb[0].mxu0 %v632
    %v634 = vpop.f32.mrb[0].mxu0
    %v635 = vadd.f32 %v559, %v634
    %v636 = vpop.f32.mrb[0].mxu0
    %637 = vdwg.mxu0
    %638 = vmatprep.subr.mxu0 0.0
    %v639 = vand.u32 %v484, 4294901760
    %v640 = vsub.f32 %v484, %v639
    %641 = vmatpush1.xpose.msra.mxu0 %v640
    %642 = vmatprep.subr.mxu0 0.0
    %643 = vmatpush1.xpose.msra.mxu0 0.0
    %644 = vmatprep.subr.mxu0 0.0
    %645 = vmatpush1.xpose.msra.mxu0 0.0
    %646 = vmatprep.subr.mxu0 0.0
    %647 = vmatpush1.xpose.msra.mxu0 0.0
    %648 = vmatprep.subr.mxu0 0.0
    %649 = vmatpush1.xpose.msra.mxu0 0.0
    %650 = vmatprep.subr.mxu0 0.0
    %651 = vmatpush1.xpose.msra.mxu0 0.0
    %652 = vmatprep.subr.mxu0 0.0
    %653 = vmatpush1.xpose.msra.mxu0 0.0
    %654 = vmatprep.subr.mxu0 0.0
    %655 = vmatpush1.xpose.msra.mxu0 0.0
    %656 = vmatprep.subr.mxu0 0.0
    %657 = vmatpush1.xpose.msra.mxu0 0.0
    %658 = vmatprep.subr.mxu0 0.0
    %659 = vmatpush1.xpose.msra.mxu0 0.0
    %660 = vmatprep.subr.mxu0 0.0
    %661 = vmatpush1.xpose.msra.mxu0 0.0
    %662 = vmatprep.subr.mxu0 0.0
    %663 = vmatpush1.xpose.msra.mxu0 0.0
    %664 = vmatprep.subr.mxu0 0.0
    %665 = vmatpush1.xpose.msra.mxu0 0.0
    %666 = vmatprep.subr.mxu0 0.0
    %667 = vmatpush1.xpose.msra.mxu0 0.0
    %668 = vmatprep.subr.mxu0 0.0
    %669 = vmatpush1.xpose.msra.mxu0 0.0
    %670 = vmatprep.subr.mxu0 0.0
    %671 = vmatpush1.xpose.msra.mxu0 0.0
    %672 = vmatprep.subr.mxu0 0.0
    %673 = vmatpush1.xpose.msra.mxu0 0.0
    %674 = vmatprep.subr.mxu0 0.0
    %675 = vmatpush1.xpose.msra.mxu0 0.0
    %676 = vmatprep.subr.mxu0 0.0
    %677 = vmatpush1.xpose.msra.mxu0 0.0
    %678 = vmatprep.subr.mxu0 0.0
    %679 = vmatpush1.xpose.msra.mxu0 0.0
    %680 = vmatprep.subr.mxu0 0.0
    %681 = vmatpush1.xpose.msra.mxu0 0.0
    %682 = vmatprep.subr.mxu0 0.0
    %683 = vmatpush1.xpose.msra.mxu0 0.0
    %684 = vmatprep.subr.mxu0 0.0
    %685 = vmatpush1.xpose.msra.mxu0 0.0
    %686 = vmatprep.subr.mxu0 0.0
    %687 = vmatpush1.xpose.msra.mxu0 0.0
    %688 = vmatprep.subr.mxu0 0.0
    %689 = vmatpush1.xpose.msra.mxu0 0.0
    %690 = vmatprep.subr.mxu0 0.0
    %691 = vmatpush1.xpose.msra.mxu0 0.0
    %692 = vmatprep.subr.mxu0 0.0
    %693 = vmatpush1.xpose.msra.mxu0 0.0
    %694 = vmatprep.subr.mxu0 0.0
    %695 = vmatpush1.xpose.msra.mxu0 0.0
    %696 = vmatprep.subr.mxu0 0.0
    %697 = vmatpush1.xpose.msra.mxu0 0.0
    %698 = vmatprep.subr.mxu0 0.0
    %699 = vmatpush1.xpose.msra.mxu0 0.0
    %700 = vmatprep.subr.mxu0 0.0
    %701 = vmatpush1.xpose.msra.mxu0 0.0
    %702 = vmatprep.subr.mxu0 0.0
    %703 = vmatpush1.xpose.msra.mxu0 0.0
    %704 = vmatprep.mubr.f32.mxu0 0.0
    %v705 = vand.u32 %v481, 4294901760
    %v706 = vsub.f32 %v481, %v705
    %707 = vmatmul.mubr.f32.gmra.mrb[0].mxu0 %v706
    %v708 = vpop.f32.mrb[0].mxu0
    %v709 = vadd.f32 %v635, %v708
    %v710 = vpop.f32.mrb[0].mxu0
    %711 = vdwg.mxu0
    %712 = vmatprep.subr.mxu0 0.0
    %v713 = vand.u32 %v484, 4294901760
    %714 = vmatpush1.xpose.msra.mxu0 %v713
    %715 = vmatprep.subr.mxu0 0.0
    %716 = vmatpush1.xpose.msra.mxu0 0.0
    %717 = vmatprep.subr.mxu0 0.0
    %718 = vmatpush1.xpose.msra.mxu0 0.0
    %719 = vmatprep.subr.mxu0 0.0
    %720 = vmatpush1.xpose.msra.mxu0 0.0
    %721 = vmatprep.subr.mxu0 0.0
    %722 = vmatpush1.xpose.msra.mxu0 0.0
    %723 = vmatprep.subr.mxu0 0.0
    %724 = vmatpush1.xpose.msra.mxu0 0.0
    %725 = vmatprep.subr.mxu0 0.0
    %726 = vmatpush1.xpose.msra.mxu0 0.0
    %727 = vmatprep.subr.mxu0 0.0
    %728 = vmatpush1.xpose.msra.mxu0 0.0
    %729 = vmatprep.subr.mxu0 0.0
    %730 = vmatpush1.xpose.msra.mxu0 0.0
    %731 = vmatprep.subr.mxu0 0.0
    %732 = vmatpush1.xpose.msra.mxu0 0.0
    %733 = vmatprep.subr.mxu0 0.0
    %734 = vmatpush1.xpose.msra.mxu0 0.0
    %735 = vmatprep.subr.mxu0 0.0
    %736 = vmatpush1.xpose.msra.mxu0 0.0
    %737 = vmatprep.subr.mxu0 0.0
    %738 = vmatpush1.xpose.msra.mxu0 0.0
    %739 = vmatprep.subr.mxu0 0.0
    %740 = vmatpush1.xpose.msra.mxu0 0.0
    %741 = vmatprep.subr.mxu0 0.0
    %742 = vmatpush1.xpose.msra.mxu0 0.0
    %743 = vmatprep.subr.mxu0 0.0
    %744 = vmatpush1.xpose.msra.mxu0 0.0
    %745 = vmatprep.subr.mxu0 0.0
    %746 = vmatpush1.xpose.msra.mxu0 0.0
    %747 = vmatprep.subr.mxu0 0.0
    %748 = vmatpush1.xpose.msra.mxu0 0.0
    %749 = vmatprep.subr.mxu0 0.0
    %750 = vmatpush1.xpose.msra.mxu0 0.0
    %751 = vmatprep.subr.mxu0 0.0
    %752 = vmatpush1.xpose.msra.mxu0 0.0
    %753 = vmatprep.subr.mxu0 0.0
    %754 = vmatpush1.xpose.msra.mxu0 0.0
    %755 = vmatprep.subr.mxu0 0.0
    %756 = vmatpush1.xpose.msra.mxu0 0.0
    %757 = vmatprep.subr.mxu0 0.0
    %758 = vmatpush1.xpose.msra.mxu0 0.0
    %759 = vmatprep.subr.mxu0 0.0
    %760 = vmatpush1.xpose.msra.mxu0 0.0
    %761 = vmatprep.subr.mxu0 0.0
    %762 = vmatpush1.xpose.msra.mxu0 0.0
    %763 = vmatprep.subr.mxu0 0.0
    %764 = vmatpush1.xpose.msra.mxu0 0.0
    %765 = vmatprep.subr.mxu0 0.0
    %766 = vmatpush1.xpose.msra.mxu0 0.0
    %767 = vmatprep.subr.mxu0 0.0
    %768 = vmatpush1.xpose.msra.mxu0 0.0
    %769 = vmatprep.subr.mxu0 0.0
    %770 = vmatpush1.xpose.msra.mxu0 0.0
    %771 = vmatprep.subr.mxu0 0.0
    %772 = vmatpush1.xpose.msra.mxu0 0.0
    %773 = vmatprep.subr.mxu0 0.0
    %774 = vmatpush1.xpose.msra.mxu0 0.0
    %775 = vmatprep.subr.mxu0 0.0
    %776 = vmatpush1.xpose.msra.mxu0 0.0
    %777 = vmatprep.mubr.f32.mxu0 0.0
    %v778 = vand.u32 %v481, 4294901760
    %v779 = vsub.f32 %v481, %v778
    %v780 = vand.u32 %v779, 4294901760
    %781 = vmatmul.mubr.f32.gmra.mrb[0].mxu0 %v780
    %v782 = vpop.f32.mrb[0].mxu0
    %v783 = vadd.f32 %v709, %v782
    %v784 = vpop.f32.mrb[0].mxu0
    %785 = vdwg.mxu0
    %786 = vmatprep.subr.mxu0 0.0
    %v787 = vand.u32 %v484, 4294901760
    %v788 = vsub.f32 %v484, %v787
    %v789 = vand.u32 %v788, 4294901760
    %790 = vmatpush1.xpose.msra.mxu0 %v789
    %791 = vmatprep.subr.mxu0 0.0
    %792 = vmatpush1.xpose.msra.mxu0 0.0
    %793 = vmatprep.subr.mxu0 0.0
    %794 = vmatpush1.xpose.msra.mxu0 0.0
    %795 = vmatprep.subr.mxu0 0.0
    %796 = vmatpush1.xpose.msra.mxu0 0.0
    %797 = vmatprep.subr.mxu0 0.0
    %798 = vmatpush1.xpose.msra.mxu0 0.0
    %799 = vmatprep.subr.mxu0 0.0
    %800 = vmatpush1.xpose.msra.mxu0 0.0
    %801 = vmatprep.subr.mxu0 0.0
    %802 = vmatpush1.xpose.msra.mxu0 0.0
    %803 = vmatprep.subr.mxu0 0.0
    %804 = vmatpush1.xpose.msra.mxu0 0.0
    %805 = vmatprep.subr.mxu0 0.0
    %806 = vmatpush1.xpose.msra.mxu0 0.0
    %807 = vmatprep.subr.mxu0 0.0
    %808 = vmatpush1.xpose.msra.mxu0 0.0
    %809 = vmatprep.subr.mxu0 0.0
    %810 = vmatpush1.xpose.msra.mxu0 0.0
    %811 = vmatprep.subr.mxu0 0.0
    %812 = vmatpush1.xpose.msra.mxu0 0.0
    %813 = vmatprep.subr.mxu0 0.0
    %814 = vmatpush1.xpose.msra.mxu0 0.0
    %815 = vmatprep.subr.mxu0 0.0
    %816 = vmatpush1.xpose.msra.mxu0 0.0
    %817 = vmatprep.subr.mxu0 0.0
    %818 = vmatpush1.xpose.msra.mxu0 0.0
    %819 = vmatprep.subr.mxu0 0.0
    %820 = vmatpush1.xpose.msra.mxu0 0.0
    %821 = vmatprep.subr.mxu0 0.0
    %822 = vmatpush1.xpose.msra.mxu0 0.0
    %823 = vmatprep.subr.mxu0 0.0
    %824 = vmatpush1.xpose.msra.mxu0 0.0
    %825 = vmatprep.subr.mxu0 0.0
    %826 = vmatpush1.xpose.msra.mxu0 0.0
    %827 = vmatprep.subr.mxu0 0.0
    %828 = vmatpush1.xpose.msra.mxu0 0.0
    %829 = vmatprep.subr.mxu0 0.0
    %830 = vmatpush1.xpose.msra.mxu0 0.0
    %831 = vmatprep.subr.mxu0 0.0
    %832 = vmatpush1.xpose.msra.mxu0 0.0
    %833 = vmatprep.subr.mxu0 0.0
    %834 = vmatpush1.xpose.msra.mxu0 0.0
    %835 = vmatprep.subr.mxu0 0.0
    %836 = vmatpush1.xpose.msra.mxu0 0.0
    %837 = vmatprep.subr.mxu0 0.0
    %838 = vmatpush1.xpose.msra.mxu0 0.0
    %839 = vmatprep.subr.mxu0 0.0
    %840 = vmatpush1.xpose.msra.mxu0 0.0
    %841 = vmatprep.subr.mxu0 0.0
    %842 = vmatpush1.xpose.msra.mxu0 0.0
    %843 = vmatprep.subr.mxu0 0.0
    %844 = vmatpush1.xpose.msra.mxu0 0.0
    %845 = vmatprep.subr.mxu0 0.0
    %846 = vmatpush1.xpose.msra.mxu0 0.0
    %847 = vmatprep.subr.mxu0 0.0
    %848 = vmatpush1.xpose.msra.mxu0 0.0
    %849 = vmatprep.subr.mxu0 0.0
    %850 = vmatpush1.xpose.msra.mxu0 0.0
    %851 = vmatprep.subr.mxu0 0.0
    %852 = vmatpush1.xpose.msra.mxu0 0.0
    %853 = vmatprep.mubr.f32.mxu0 0.0
    %v854 = vand.u32 %v481, 4294901760
    %855 = vmatmul.mubr.f32.gmra.mrb[0].mxu0 %v854
    %v856 = vpop.f32.mrb[0].mxu0
    %v857 = vadd.f32 %v783, %v856
    %v858 = vpop.f32.mrb[0].mxu0
    %859 = vdwg.mxu0
    %860 = vmatprep.subr.mxu0 0.0
    %v861 = vand.u32 %v484, 4294901760
    %862 = vmatpush1.xpose.msra.mxu0 %v861
    %863 = vmatprep.subr.mxu0 0.0
    %864 = vmatpush1.xpose.msra.mxu0 0.0
    %865 = vmatprep.subr.mxu0 0.0
    %866 = vmatpush1.xpose.msra.mxu0 0.0
    %867 = vmatprep.subr.mxu0 0.0
    %868 = vmatpush1.xpose.msra.mxu0 0.0
    %869 = vmatprep.subr.mxu0 0.0
    %870 = vmatpush1.xpose.msra.mxu0 0.0
    %871 = vmatprep.subr.mxu0 0.0
    %872 = vmatpush1.xpose.msra.mxu0 0.0
    %873 = vmatprep.subr.mxu0 0.0
    %874 = vmatpush1.xpose.msra.mxu0 0.0
    %875 = vmatprep.subr.mxu0 0.0
    %876 = vmatpush1.xpose.msra.mxu0 0.0
    %877 = vmatprep.subr.mxu0 0.0
    %878 = vmatpush1.xpose.msra.mxu0 0.0
    %879 = vmatprep.subr.mxu0 0.0
    %880 = vmatpush1.xpose.msra.mxu0 0.0
    %881 = vmatprep.subr.mxu0 0.0
    %882 = vmatpush1.xpose.msra.mxu0 0.0
    %883 = vmatprep.subr.mxu0 0.0
    %884 = vmatpush1.xpose.msra.mxu0 0.0
    %885 = vmatprep.subr.mxu0 0.0
    %886 = vmatpush1.xpose.msra.mxu0 0.0
    %887 = vmatprep.subr.mxu0 0.0
    %888 = vmatpush1.xpose.msra.mxu0 0.0
    %889 = vmatprep.subr.mxu0 0.0
    %890 = vmatpush1.xpose.msra.mxu0 0.0
    %891 = vmatprep.subr.mxu0 0.0
    %892 = vmatpush1.xpose.msra.mxu0 0.0
    %893 = vmatprep.subr.mxu0 0.0
    %894 = vmatpush1.xpose.msra.mxu0 0.0
    %895 = vmatprep.subr.mxu0 0.0
    %896 = vmatpush1.xpose.msra.mxu0 0.0
    %897 = vmatprep.subr.mxu0 0.0
    %898 = vmatpush1.xpose.msra.mxu0 0.0
    %899 = vmatprep.subr.mxu0 0.0
    %900 = vmatpush1.xpose.msra.mxu0 0.0
    %901 = vmatprep.subr.mxu0 0.0
    %902 = vmatpush1.xpose.msra.mxu0 0.0
    %903 = vmatprep.subr.mxu0 0.0
    %904 = vmatpush1.xpose.msra.mxu0 0.0
    %905 = vmatprep.subr.mxu0 0.0
    %906 = vmatpush1.xpose.msra.mxu0 0.0
    %907 = vmatprep.subr.mxu0 0.0
    %908 = vmatpush1.xpose.msra.mxu0 0.0
    %909 = vmatprep.subr.mxu0 0.0
    %910 = vmatpush1.xpose.msra.mxu0 0.0
    %911 = vmatprep.subr.mxu0 0.0
    %912 = vmatpush1.xpose.msra.mxu0 0.0
    %913 = vmatprep.subr.mxu0 0.0
    %914 = vmatpush1.xpose.msra.mxu0 0.0
    %915 = vmatprep.subr.mxu0 0.0
    %916 = vmatpush1.xpose.msra.mxu0 0.0
    %917 = vmatprep.subr.mxu0 0.0
    %918 = vmatpush1.xpose.msra.mxu0 0.0
    %919 = vmatprep.subr.mxu0 0.0
    %920 = vmatpush1.xpose.msra.mxu0 0.0
    %921 = vmatprep.subr.mxu0 0.0
    %922 = vmatpush1.xpose.msra.mxu0 0.0
    %923 = vmatprep.subr.mxu0 0.0
    %924 = vmatpush1.xpose.msra.mxu0 0.0
    %925 = vmatprep.mubr.f32.mxu0 0.0
    %v926 = vand.u32 %v481, 4294901760
    %927 = vmatmul.mubr.f32.gmra.mrb[0].mxu0 %v926
    %v928 = vpop.f32.mrb[0].mxu0
    %v929 = vadd.f32 %v857, %v928
    %v930 = vpop.f32.mrb[0].mxu0
    %931 = vdwg.mxu0
    %v932 = vmax.f32 %v929, 1e-24
    %v933 = vrsqrt.pop %v932
    %v934 = vmul.f32 %v477, %v933
    %vm935 = vcmask 57344
    %936 = vst.msk [vmem:[#allocation5] sm:$0x1] %vm935, %v934
    // Predicated region
    $region14: #{tpu_custom_call.1} parent=1 // pred_check
      _
    $region15: #{tpu_custom_call.1} parent=1 // pred_check_branch
      %938 = sbr.rel (0) target = $region17
    $region16: #{tpu_custom_call.1} parent=1 // pred_region
      %s940 = ssub.s32 16, 16
      %941 = vsyncadd [#allocation4], %s940
      %s943 = sshll.u32 [#allocation5], 4
      %s944 = int_to_ptr.vmem [resolvable:$true] %s943
      %946 = dma.vmem_to_hbm [thread:$0]  %s944, 16, %s2, [#allocation4]
    $region17: #{tpu_custom_call.1} parent=1 // pred_fallthru
      _
    // Predicated region
    $region18: #{tpu_custom_call.1} parent=1 // pred_check
      _
    $region19: #{tpu_custom_call.1} parent=1 // pred_check_branch
      %948 = sbr.rel (0) target = $region21
    $region20: #{tpu_custom_call.1} parent=1 // pred_region
      %949 = dma.done [#allocation4], 16
    $region21: #{tpu_custom_call.1} parent=1 // pred_fallthru
      _
    %950 = vsyncpa [#allocation3], 1
    %951 = vsyncpa [#allocation4], 1

</llo_original>
